<compile_context>
chip_gen: v5e
topology: v5e:2x2
jax: 0.10.0
libtpu: 0.0.40
codegen_flags: <defaults>
</compile_context>

<pallas_src>
import math
import functools

import jax
import jax.numpy as jnp
from jax.experimental import pallas as pl
from jax.experimental.pallas import tpu as pltpu


def _round_up(a, b):
    return (a + b - 1) // b * b


_VMEM_LIMIT_BYTES = 48 * 1024 * 1024          # above the 16/32 MiB scoped defaults,
                                              # safely under v7x's 64 MiB physical VMEM
_RESIDENT_SUPPORT_BYTES = 8 * 1024 * 1024     # keep support fully VMEM-resident when it fits


def _sublane(dtype):
    return 16 if jnp.dtype(dtype) == jnp.dtype(jnp.bfloat16) else 8


def _choose_tiles(n, dtype):
    """Row / contraction tile sizes for the adj @ support kernel."""
    sub = _sublane(dtype)
    if jnp.dtype(dtype) == jnp.dtype(jnp.bfloat16):
        tm_max = tk_max = 2048            # ~16 MiB double-buffered adj blocks
    else:
        tm_max = tk_max = 1024            # f32: ~8 MiB, comfortable on v7x
    # Row tile: sublane aligned; keep >= 2 row tiles so the 'parallel' row axis
    # can be sharded across v7x's two TensorCores.
    tm = min(tm_max, _round_up(n, sub))
    half = _round_up(-(-n // 2), sub)
    if half >= sub:
        tm = min(tm, half)
    tk = min(tk_max, _round_up(n, 128))   # contraction tile, lane aligned
    return tm, tk


def prepare_gcn_adj(adj, *, compute_dtype=jnp.bfloat16, tm=None, tk=None):
    """One-time adjacency preprocessing (hoisted out of the forward pass).

    Casts adj to the compute dtype and zero-pads it to a tile-aligned shape.
    Do this once per graph; the result is reused across layers / training steps,
    so the full n x n cast+pad HBM pass is not paid on every forward call.
    """
    n = adj.shape[0]
    assert adj.shape == (n, n)
    if tm is None or tk is None:
        tm, tk = _choose_tiles(n, compute_dtype)
    n_rows = _round_up(n, tm)
    n_cols = _round_up(n, tk)
    adj_p = jnp.pad(adj.astype(compute_dtype), ((0, n_rows - n), (0, n_cols - n)))
    # TODO(synk): optional int8 (v5e/v6e) or fp8 (v7x) adjacency quantization with
    # per-row scales would halve the dominant HBM stream again; needs validation.
    return adj_p, tm, tk


# --------------------------------------------------------------------------- #
# Kernel 1: support = X @ W   (row-tiled, W fully resident, embarrassingly parallel)
# --------------------------------------------------------------------------- #
def _support_kernel(x_ref, w_ref, sup_ref):
    sup_ref[...] = jnp.dot(
        x_ref[...], w_ref[...], preferred_element_type=jnp.float32
    ).astype(sup_ref.dtype)


# --------------------------------------------------------------------------- #
# Kernel 2: out = adj @ support
#   out block index is constant along k, so out_ref stays VMEM-resident and
#   doubles as the f32 accumulator (no scratch; written back once per row tile).
# --------------------------------------------------------------------------- #
def _spmm_stream_kernel(adj_ref, sup_ref, out_ref):
    @pl.when(pl.program_id(1) == 0)
    def _():
        out_ref[...] = jnp.zeros_like(out_ref)

    out_ref[...] += jnp.dot(
        adj_ref[...], sup_ref[...], preferred_element_type=jnp.float32
    )


def _spmm_resident_kernel(adj_ref, sup_ref, out_ref, *, tk):
    # sup_ref holds the ENTIRE support matrix (constant index_map -> DMA'd once,
    # then reused from VMEM); slice the K tile in-kernel.
    k = pl.program_id(1)

    @pl.when(k == 0)
    def _():
        out_ref[...] = jnp.zeros_like(out_ref)

    start = pl.multiple_of(k * tk, tk)
    out_ref[...] += jnp.dot(
        adj_ref[...], sup_ref[pl.ds(start, tk), :],
        preferred_element_type=jnp.float32,
    )


# --------------------------------------------------------------------------- #
# Wrapper
# --------------------------------------------------------------------------- #
@functools.partial(jax.jit, static_argnames=("tm", "tk"))
def gcn_forward(x, weights, adj_prepared, *, tm, tk):
    """GCN_impl.forward: adj @ (x @ weights), returned as float32 of shape (n, f_out).

    `adj_prepared` must come from prepare_gcn_adj (pre-cast, pre-padded)."""
    n, f_in = x.shape
    f_in_w, f_out = weights.shape
    assert f_in_w == f_in
    n_rows, n_cols = adj_prepared.shape
    assert n_rows % tm == 0 and n_cols % tk == 0
    assert n_rows >= n and n_cols >= n

    cdt = adj_prepared.dtype

    # Per-call pads only touch the small (n, f_in) / (f_in, f_out) operands;
    # the n x n adjacency pad/cast lives in prepare_gcn_adj.
    x_p = jnp.pad(x.astype(cdt), ((0, n_cols - n), (0, 0)))
    w_c = weights.astype(cdt)

    # ---- support = X @ W ------------------------------------------------- #
    support = pl.pallas_call(
        _support_kernel,
        out_shape=jax.ShapeDtypeStruct((n_cols, f_out), cdt),
        grid_spec=pltpu.PrefetchScalarGridSpec(
            num_scalar_prefetch=0,
            grid=(n_cols // tk,),
            in_specs=[
                pl.BlockSpec((tk, f_in), lambda i: (i, 0)),      # X row tile
                pl.BlockSpec((f_in, f_out), lambda i: (0, 0)),   # W (full, resident)
            ],
            out_specs=pl.BlockSpec((tk, f_out), lambda i: (i, 0)),
        ),
        compiler_params=pltpu.CompilerParams(
            dimension_semantics=("parallel",),
            vmem_limit_bytes=_VMEM_LIMIT_BYTES,
        ),
    )(x_p, w_c)

    # ---- output = adj @ support  (row axis parallel, k axis reduction) --- #
    support_bytes = n_cols * f_out * jnp.dtype(cdt).itemsize
    resident = support_bytes <= _RESIDENT_SUPPORT_BYTES

    if resident:
        kernel = functools.partial(_spmm_resident_kernel, tk=tk)
        # Constant block index -> fetched once and kept in VMEM across the grid.
        # (pl.Buffered(1) could reclaim the second buffer; budgeted for here.)
        sup_spec = pl.BlockSpec((n_cols, f_out), lambda i, k: (0, 0))
    else:
        kernel = _spmm_stream_kernel
        sup_spec = pl.BlockSpec((tk, f_out), lambda i, k: (k, 0))

    out_p = pl.pallas_call(
        kernel,
        out_shape=jax.ShapeDtypeStruct((n_rows, f_out), jnp.float32),
        grid_spec=pltpu.PrefetchScalarGridSpec(
            num_scalar_prefetch=0,
            grid=(n_rows // tm, n_cols // tk),
            in_specs=[
                pl.BlockSpec((tm, tk), lambda i, k: (i, k)),     # adj tile
                sup_spec,                                        # support
            ],
            out_specs=pl.BlockSpec((tm, f_out), lambda i, k: (i, 0)),
        ),
        compiler_params=pltpu.CompilerParams(
            dimension_semantics=("parallel", "arbitrary"),
            vmem_limit_bytes=_VMEM_LIMIT_BYTES,
        ),
    )(adj_prepared, support)

    return out_p[:n, :]


def init_gcn_weights(key, in_features, out_features):
    # Matches GCN_impl.init_parameters: uniform(-stdv, stdv), stdv = 1/sqrt(out_features)
    stdv = 1.0 / math.sqrt(out_features)
    return jax.random.uniform(
        key, (in_features, out_features), dtype=jnp.float32, minval=-stdv, maxval=stdv
    )


if __name__ == "__main__":
    # Small deterministic example.
    N = 64        # number of graph nodes
    F_IN = 32     # in_features
    F_OUT = 16    # out_features

    key = jax.random.PRNGKey(0)
    k_w, k_x, k_a = jax.random.split(key, 3)

    weights = init_gcn_weights(k_w, F_IN, F_OUT)
    x = jax.random.normal(k_x, (N, F_IN), dtype=jnp.float32)

    # Simple symmetric-normalized dense adjacency (self-loops + random edges).
    raw = (jax.random.uniform(k_a, (N, N)) > 0.9).astype(jnp.float32)
    adj_bin = jnp.clip(raw + raw.T + jnp.eye(N, dtype=jnp.float32), 0.0, 1.0)
    deg = jnp.sum(adj_bin, axis=1)
    d_inv_sqrt = 1.0 / jnp.sqrt(deg)
    adj = adj_bin * d_inv_sqrt[:, None] * d_inv_sqrt[None, :]

    ref = adj @ (x @ weights)

    # f32 path: must match reference tightly.
    adj_f32, tm32, tk32 = prepare_gcn_adj(adj, compute_dtype=jnp.float32)
    out_f32 = jax.block_until_ready(
        gcn_forward(x, weights, adj_f32, tm=tm32, tk=tk32)
    )
    assert out_f32.shape == (N, F_OUT)
    assert jnp.allclose(out_f32, ref, atol=1e-4, rtol=1e-4), "f32 mismatch vs reference"

    # Default bf16 bandwidth-optimized path (bf16 adj/support, f32 MXU accumulate).
    adj_bf16, tm16, tk16 = prepare_gcn_adj(adj)   # compute_dtype defaults to bf16
    out_bf16 = jax.block_until_ready(
        gcn_forward(x, weights, adj_bf16, tm=tm16, tk=tk16)
    )
    assert out_bf16.shape == (N, F_OUT)
    assert jnp.allclose(out_bf16, ref, atol=1e-2, rtol=1e-2), "bf16 mismatch vs reference"

    print("KERNEL_OK")
</pallas_src>

<mosaic_0001>
module attributes {stable_mosaic.version = 11 : i64} {
  func.func @_support_kernel(%arg0: i32, %arg1: memref<128x32xf32, #tpu.memory_space<vmem>>, %arg2: memref<32x16xf32, #tpu.memory_space<vmem>>, %arg3: memref<128x16xf32, #tpu.memory_space<vmem>>) attributes {dimension_semantics = [#tpu.dimension_semantics<parallel>], iteration_bounds = array<i64: 1>, scalar_prefetch = 0 : i64, scratch_operands = 0 : i64, tpu.core_type = #tpu.core_type<tc>, window_params = [{transform_indices = @transform_0, window_bounds = array<i64: 128, 32>}, {pipeline_mode = #tpu.pipeline_mode<synchronous>, transform_indices = @transform_1, window_bounds = array<i64: 32, 16>}, {transform_indices = @transform_2, window_bounds = array<i64: 128, 16>}]} {
    %c0 = arith.constant 0 : index
    %c0_0 = arith.constant 0 : index
    %0 = vector.load %arg1[%c0, %c0_0] : memref<128x32xf32, #tpu.memory_space<vmem>>, vector<128x32xf32>
    %c0_1 = arith.constant 0 : index
    %c0_2 = arith.constant 0 : index
    %1 = vector.load %arg2[%c0_1, %c0_2] : memref<32x16xf32, #tpu.memory_space<vmem>>, vector<32x16xf32>
    %cst = arith.constant dense<0.000000e+00> : vector<128x16xf32>
    %2 = tpu.matmul %0, %1, %cst {dimension_numbers = #tpu.dot_dimension_numbers<[1], [0], [0], [1], [0, 0, 1, 1], [], []>} : vector<128x32xf32>, vector<32x16xf32>, vector<128x16xf32> -> vector<128x16xf32>
    %c0_3 = arith.constant 0 : index
    %c0_4 = arith.constant 0 : index
    %3 = vector.load %arg3[%c0_3, %c0_4] : memref<128x16xf32, #tpu.memory_space<vmem>>, vector<128x16xf32>
    tpu.vector_store %arg3[%c0_3, %c0_4], %2 {strides = array<i32>} : memref<128x16xf32, #tpu.memory_space<vmem>>, vector<128x16xf32>,
    return
  }
  func.func @transform_0(%arg0: i32) -> (i32, i32) {
    %c0_i32 = arith.constant 0 : i32
    %c0_i32_0 = arith.constant 0 : i32
    return %arg0, %c0_i32 : i32, i32
  }
  func.func @transform_1(%arg0: i32) -> (i32, i32) {
    %c0_i32 = arith.constant 0 : i32
    %c0_i32_0 = arith.constant 0 : i32
    %c0_i32_1 = arith.constant 0 : i32
    return %c0_i32, %c0_i32_0 : i32, i32
  }
  func.func @transform_2(%arg0: i32) -> (i32, i32) {
    %c0_i32 = arith.constant 0 : i32
    %c0_i32_0 = arith.constant 0 : i32
    return %arg0, %c0_i32 : i32, i32
  }
}

module attributes {stable_mosaic.version = 11 : i64} {
  func.func @_spmm_resident_kernel(%arg0: i32, %arg1: i32, %arg2: memref<32x128xf32, #tpu.memory_space<vmem>>, %arg3: memref<128x16xf32, #tpu.memory_space<vmem>>, %arg4: memref<32x16xf32, #tpu.memory_space<vmem>>) attributes {dimension_semantics = [#tpu.dimension_semantics<parallel>, #tpu.dimension_semantics<arbitrary>], iteration_bounds = array<i64: 2, 1>, scalar_prefetch = 0 : i64, scratch_operands = 0 : i64, tpu.core_type = #tpu.core_type<tc>, window_params = [{transform_indices = @transform_0, window_bounds = array<i64: 32, 128>}, {pipeline_mode = #tpu.pipeline_mode<synchronous>, transform_indices = @transform_1, window_bounds = array<i64: 128, 16>}, {transform_indices = @transform_2, window_bounds = array<i64: 32, 16>}]} {
    %c0_i32 = arith.constant 0 : i32
    %0 = arith.cmpi eq, %arg1, %c0_i32 : i32
    %1 = arith.extui %0 : i1 to i32
    %c0_i32_0 = arith.constant 0 : i32
    %2 = arith.cmpi ne, %1, %c0_i32_0 : i32
    scf.if %2 {
      %cst_7 = arith.constant 0.000000e+00 : f32
      %12 = vector.broadcast %cst_7 : f32 to vector<32x16xf32>
      %c0_8 = arith.constant 0 : index
      %c0_9 = arith.constant 0 : index
      %13 = vector.load %arg4[%c0_8, %c0_9] : memref<32x16xf32, #tpu.memory_space<vmem>>, vector<32x16xf32>
      tpu.vector_store %arg4[%c0_8, %c0_9], %12 {strides = array<i32>} : memref<32x16xf32, #tpu.memory_space<vmem>>, vector<32x16xf32>,
    } else {
    }
    %c128_i32 = arith.constant 128 : i32
    %3 = arith.muli %arg1, %c128_i32 : i32
    %4 = tpu.assume_multiple %3, 128 : i32
    %c0 = arith.constant 0 : index
    %c0_1 = arith.constant 0 : index
    %5 = vector.load %arg4[%c0, %c0_1] : memref<32x16xf32, #tpu.memory_space<vmem>>, vector<32x16xf32>
    %c0_2 = arith.constant 0 : index
    %c0_3 = arith.constant 0 : index
    %6 = vector.load %arg2[%c0_2, %c0_3] : memref<32x128xf32, #tpu.memory_space<vmem>>, vector<32x128xf32>
    %7 = arith.index_cast %4 : i32 to index
    %c0_4 = arith.constant 0 : index
    %8 = vector.load %arg3[%7, %c0_4] : memref<128x16xf32, #tpu.memory_space<vmem>>, vector<128x16xf32>
    %cst = arith.constant dense<0.000000e+00> : vector<32x16xf32>
    %9 = tpu.matmul %6, %8, %cst {dimension_numbers = #tpu.dot_dimension_numbers<[1], [0], [0], [1], [0, 0, 1, 1], [], []>} : vector<32x128xf32>, vector<128x16xf32>, vector<32x16xf32> -> vector<32x16xf32>
    %10 = arith.addf %5, %9 : vector<32x16xf32>
    %c0_5 = arith.constant 0 : index
    %c0_6 = arith.constant 0 : index
    %11 = vector.load %arg4[%c0_5, %c0_6] : memref<32x16xf32, #tpu.memory_space<vmem>>, vector<32x16xf32>
    tpu.vector_store %arg4[%c0_5, %c0_6], %10 {strides = array<i32>} : memref<32x16xf32, #tpu.memory_space<vmem>>, vector<32x16xf32>,
    return
  }
  func.func @transform_0(%arg0: i32, %arg1: i32) -> (i32, i32) {
    %c0_i32 = arith.constant 0 : i32
    return %arg0, %arg1 : i32, i32
  }
  func.func @transform_1(%arg0: i32, %arg1: i32) -> (i32, i32) {
    %c0_i32 = arith.constant 0 : i32
    %c0_i32_0 = arith.constant 0 : i32
    %c0_i32_1 = arith.constant 0 : i32
    return %c0_i32, %c0_i32_0 : i32, i32
  }
  func.func @transform_2(%arg0: i32, %arg1: i32) -> (i32, i32) {
    %c0_i32 = arith.constant 0 : i32
    %c0_i32_0 = arith.constant 0 : i32
    return %arg0, %c0_i32 : i32, i32
  }
}

</mosaic_0001>

<llo_original>
// kernel: gcn_forward.2
$region0: #{gcn_forward.2}
  #allocation0 [shape = 'u32[]', space=smem, size = 0x4, offset = 0x4, fixed_abs, tag = 'smem constant byte address 0x4 - core index']
  #allocation1 [shape = 'u32[72,128]{1,0:T(1,128)}', space=vmem, size = 0x9000, scoped, tag = 'internal scratch']
  %s0 = inlined_call_operand.vmem [shape: f32[128,32], index: 0, kind: input, shape index: {}]
  %s1 = inlined_call_operand.vmem [shape: f32[32,16], index: 1, kind: input, shape index: {}]
  %s2 = inlined_call_operand.vmem [shape: f32[128,16], index: 2, kind: output, shape index: {}]
  %s3 = sld [smem:[#allocation0]]
  $region18: #{gcn_forward.2} parent=0
    _
  %s5 = ssub.s32 1, %s3
  %s6 = scalar_select 0, %s5, %s3
  // Predicated region
  $region2: #{gcn_forward.2} parent=0 // pred_check
    _
  $region3: #{gcn_forward.2} parent=0 // pred_check_branch
    %8 = sbr.rel (0) target = $region5
  $region4: #{gcn_forward.2} parent=0 // pred_region
    _
  $region5: #{gcn_forward.2} parent=0 // pred_fallthru
    _
  // Predicated region
  $region6: #{gcn_forward.2} parent=0 // pred_check
    _
  $region7: #{gcn_forward.2} parent=0 // pred_check_branch
    %10 = sbr.rel (0) target = $region9
  $region8: #{gcn_forward.2} parent=0 // pred_region
    _
  $region9: #{gcn_forward.2} parent=0 // pred_fallthru
    _
  %v11 = vld [vmem:[%s0] sm:$0xff]
  %v12 = vld [vmem:[%s0 + $0x8] sm:$0xff]
  %v13 = vld [vmem:[%s0 + $0x10] sm:$0xff]
  %v14 = vld [vmem:[%s0 + $0x18] sm:$0xff]
  %v15 = vld [vmem:[%s0 + $0x20] sm:$0xff]
  %v16 = vld [vmem:[%s0 + $0x28] sm:$0xff]
  %v17 = vld [vmem:[%s0 + $0x30] sm:$0xff]
  %v18 = vld [vmem:[%s0 + $0x38] sm:$0xff]
  %v19 = vld [vmem:[%s0 + $0x40] sm:$0xff]
  %v20 = vld [vmem:[%s0 + $0x48] sm:$0xff]
  %v21 = vld [vmem:[%s0 + $0x50] sm:$0xff]
  %v22 = vld [vmem:[%s0 + $0x58] sm:$0xff]
  %v23 = vld [vmem:[%s0 + $0x60] sm:$0xff]
  %v24 = vld [vmem:[%s0 + $0x68] sm:$0xff]
  %v25 = vld [vmem:[%s0 + $0x70] sm:$0xff]
  %v26 = vld [vmem:[%s0 + $0x78] sm:$0xff]
  %v27 = vld [vmem:[%s1] sm:$0xff]
  %v28 = vld [vmem:[%s1 + $0x8] sm:$0xff]
  %v29 = vld [vmem:[%s1 + $0x10] sm:$0xff]
  %v30 = vld [vmem:[%s1 + $0x18] sm:$0xff]
  %vm31 = vcmask 261120
  %v33 = vsel %vm31, %v11, 0
  %v36 = vsel %vm31, %v12, 0
  %v39 = vsel %vm31, %v13, 0
  %v42 = vsel %vm31, %v14, 0
  %v45 = vsel %vm31, %v15, 0
  %v48 = vsel %vm31, %v16, 0
  %v51 = vsel %vm31, %v17, 0
  %v54 = vsel %vm31, %v18, 0
  %v57 = vsel %vm31, %v19, 0
  %v60 = vsel %vm31, %v20, 0
  %v63 = vsel %vm31, %v21, 0
  %v66 = vsel %vm31, %v22, 0
  %v69 = vsel %vm31, %v23, 0
  %v72 = vsel %vm31, %v24, 0
  %v75 = vsel %vm31, %v25, 0
  %v78 = vsel %vm31, %v26, 0
  %80 = vmatpush.msra.mxu0 0.0
  %81 = vmatpush.msra.mxu0 0.0
  %82 = vmatpush.msra.mxu0 0.0
  %83 = vmatpush.msra.mxu0 0.0
  %84 = vmatpush.msra.mxu0 0.0
  %85 = vmatpush.msra.mxu0 0.0
  %86 = vmatpush.msra.mxu0 0.0
  %87 = vmatpush.msra.mxu0 0.0
  %88 = vmatpush.msra.mxu0 0.0
  %89 = vmatpush.msra.mxu0 0.0
  %90 = vmatpush.msra.mxu0 0.0
  %91 = vmatpush.msra.mxu0 0.0
  %92 = vmatpush.msra.mxu0 %v30
  %93 = vmatpush.msra.mxu0 %v29
  %94 = vmatpush.msra.mxu0 %v28
  %95 = vmatpush.msra.mxu0 %v27
  %96 = vmatmul.f32.gmra.mxu0 %v33
  %v97 = vpop.f32.mrf.mxu0
  %v98 = vadd.f32 0.0, %v97
  %99 = vmatmul.f32.gmra.mxu0 %v36
  %v100 = vpop.f32.mrf.mxu0
  %v101 = vadd.f32 0.0, %v100
  %102 = vmatmul.f32.gmra.mxu0 %v39
  %v103 = vpop.f32.mrf.mxu0
  %v104 = vadd.f32 0.0, %v103
  %105 = vmatmul.f32.gmra.mxu0 %v42
  %v106 = vpop.f32.mrf.mxu0
  %v107 = vadd.f32 0.0, %v106
  %108 = vmatmul.f32.gmra.mxu0 %v45
  %v109 = vpop.f32.mrf.mxu0
  %v110 = vadd.f32 0.0, %v109
  %111 = vmatmul.f32.gmra.mxu0 %v48
  %v112 = vpop.f32.mrf.mxu0
  %v113 = vadd.f32 0.0, %v112
  %114 = vmatmul.f32.gmra.mxu0 %v51
  %v115 = vpop.f32.mrf.mxu0
  %v116 = vadd.f32 0.0, %v115
  %117 = vmatmul.f32.gmra.mxu0 %v54
  %v118 = vpop.f32.mrf.mxu0
  %v119 = vadd.f32 0.0, %v118
  %120 = vmatmul.f32.gmra.mxu0 %v57
  %v121 = vpop.f32.mrf.mxu0
  %v122 = vadd.f32 0.0, %v121
  %123 = vmatmul.f32.gmra.mxu0 %v60
  %v124 = vpop.f32.mrf.mxu0
  %v125 = vadd.f32 0.0, %v124
  %126 = vmatmul.f32.gmra.mxu0 %v63
  %v127 = vpop.f32.mrf.mxu0
  %v128 = vadd.f32 0.0, %v127
  %129 = vmatmul.f32.gmra.mxu0 %v66
  %v130 = vpop.f32.mrf.mxu0
  %v131 = vadd.f32 0.0, %v130
  %132 = vmatmul.f32.gmra.mxu0 %v69
  %v133 = vpop.f32.mrf.mxu0
  %v134 = vadd.f32 0.0, %v133
  %135 = vmatmul.f32.gmra.mxu0 %v72
  %v136 = vpop.f32.mrf.mxu0
  %v137 = vadd.f32 0.0, %v136
  %138 = vmatmul.f32.gmra.mxu0 %v75
  %v139 = vpop.f32.mrf.mxu0
  %v140 = vadd.f32 0.0, %v139
  %141 = vmatmul.f32.gmra.mxu0 %v78
  %v142 = vpop.f32.mrf.mxu0
  %v143 = vadd.f32 0.0, %v142
  %144 = vdwg.mxu0
  %vm145 = vcmask 130048
  %146 = vst.msk [vmem:[%s2] sm:$0xff] %vm145, %v98
  %147 = vst.msk [vmem:[%s2 + $0x8] sm:$0xff] %vm145, %v101
  %148 = vst.msk [vmem:[%s2 + $0x10] sm:$0xff] %vm145, %v104
  %149 = vst.msk [vmem:[%s2 + $0x18] sm:$0xff] %vm145, %v107
  %150 = vst.msk [vmem:[%s2 + $0x20] sm:$0xff] %vm145, %v110
  %151 = vst.msk [vmem:[%s2 + $0x28] sm:$0xff] %vm145, %v113
  %152 = vst.msk [vmem:[%s2 + $0x30] sm:$0xff] %vm145, %v116
  %153 = vst.msk [vmem:[%s2 + $0x38] sm:$0xff] %vm145, %v119
  %154 = vst.msk [vmem:[%s2 + $0x40] sm:$0xff] %vm145, %v122
  %155 = vst.msk [vmem:[%s2 + $0x48] sm:$0xff] %vm145, %v125
  %156 = vst.msk [vmem:[%s2 + $0x50] sm:$0xff] %vm145, %v128
  %157 = vst.msk [vmem:[%s2 + $0x58] sm:$0xff] %vm145, %v131
  %158 = vst.msk [vmem:[%s2 + $0x60] sm:$0xff] %vm145, %v134
  %159 = vst.msk [vmem:[%s2 + $0x68] sm:$0xff] %vm145, %v137
  %160 = vst.msk [vmem:[%s2 + $0x70] sm:$0xff] %vm145, %v140
  %161 = vst.msk [vmem:[%s2 + $0x78] sm:$0xff] %vm145, %v143
  // Predicated region
  $region10: #{gcn_forward.2} parent=0 // pred_check
    _
  $region11: #{gcn_forward.2} parent=0 // pred_check_branch
    %163 = sbr.rel (0) target = $region13
  $region12: #{gcn_forward.2} parent=0 // pred_region
    _
  $region13: #{gcn_forward.2} parent=0 // pred_fallthru
    _
  // Predicated region
  $region14: #{gcn_forward.2} parent=0 // pred_check
    _
  $region15: #{gcn_forward.2} parent=0 // pred_check_branch
    %165 = sbr.rel (0) target = $region17
  $region16: #{gcn_forward.2} parent=0 // pred_region
    _
  $region17: #{gcn_forward.2} parent=0 // pred_fallthru
    _

// kernel: gcn_forward.3
$region0: #{gcn_forward.3}
  #allocation0 [shape = 'u32[]', space=smem, size = 0x4, offset = 0x4, fixed_abs, tag = 'smem constant byte address 0x4 - core index']
  #allocation1 [shape = 'u32[72,128]{1,0:T(1,128)}', space=vmem, size = 0x9000, scoped, tag = 'internal scratch']
  %s0 = inlined_call_operand.vmem [shape: f32[64,128], index: 0, kind: input, shape index: {}]
  %s1 = inlined_call_operand.vmem [shape: f32[128,16], index: 1, kind: input, shape index: {}]
  %s2 = inlined_call_operand.vmem [shape: f32[64,16], index: 2, kind: output, shape index: {}]
  %s3 = sld [smem:[#allocation0]]
  $region45: #{gcn_forward.3} parent=0
    _
  %s5 = ssub.s32 1, %s3
  %s6 = scalar_select 0, %s5, %s3
  loop: start=0, step=1, limit=4
  $region2: #{gcn_forward.3} parent=0 // loop_pre_header
    _
  $region3: #{gcn_forward.3} parent=0 // loop_header
    %s8 = sphi 0, %s12
    %p9 = scmp.ge.s32.totalorder %s8, 4
    %s15 = sphi 0, %s27
    %s16 = sphi 0, %s23
    %s17 = sphi 0, %s15
    %s18 = sphi 0, %s16
    %s19 = sphi 0, %s17
    %s20 = sphi 0, %s18
    %s32 = sphi 0, %s34
    %s35 = sphi 0, %s32
    %s36 = sphi 0, %s35
    %s52 = sphi 0, %s36
    %s56 = sphi 0, %s56
    %s58 = sphi 0, %s56
    %s59 = sphi 0, %s58
    %s73 = sphi 0, %s59
    %s79 = sphi 0, %s81
    %s82 = sphi 0, %s79
    %s83 = sphi 0, %s82
    %s99 = sphi 0, %s83
  $region4: #{gcn_forward.3} parent=0 // loop_header_branch
    %11 = sbr.rel (%p9) target = $region8
  $region5: #{gcn_forward.3} parent=0 // loop_body
    %s13 = ssub.s32 %s8, 1
    %s14 = ssub.s32 %s8, 2
    %s21 = sadd.s32 1, %s16
    %p22 = scmp.ge.s32.totalorder %s21, 1
    %s23 = scalar_select %p22, 0, %s21
    %s24 = sadd.s32 1, %s15
    %s25 = scalar_select %p22, %s24, %s15
    %p26 = scmp.ge.s32.totalorder %s25, 2
    %s27 = scalar_select %p26, 0, %s25
    %s28 = ssub.s32 %s15, %s27
    %s29 = ssub.s32 %s16, %s23
    %s30 = sor.u32 %s28, %s29
    %p31 = scmp.eq.s32.totalorder %s30, 0
    %s33 = sadd.s32 %s32, 1
    %s34 = scalar_select %p31, %s32, %s33
    %p37 = pneg %p31
    %p38 = scmp.eq.s32.totalorder %s8, 1
    %p39 = por %p37, %p38
    %p40 = scmp.ne.s32.totalorder %s32, %s35
    %p41 = scmp.eq.s32.totalorder %s8, 0
    %p42 = por %p40, %p41
    %p43 = scmp.ne.s32.totalorder %s32, %s35
    %p44 = scmp.eq.s32.totalorder %s13, 1
    %p45 = por %p43, %p44
    %p46 = scmp.ne.s32.totalorder %s35, %s36
    %p47 = scmp.eq.s32.totalorder %s13, 0
    %p48 = por %p46, %p47
    %p49 = scmp.ne.s32.totalorder %s35, %s36
    %p50 = scmp.eq.s32.totalorder %s14, 1
    %p51 = por %p49, %p50
    %p53 = scmp.ne.s32.totalorder %s36, %s52
    %p54 = scmp.eq.s32.totalorder %s14, 0
    %p55 = por %p53, %p54
    %s57 = sadd.s32 %s56, 1
    %p60 = scmp.eq.s32.totalorder %s8, 1
    %p61 = scmp.ne.s32.totalorder %s56, %s58
    %p62 = scmp.eq.s32.totalorder %s8, 0
    %p63 = por %p61, %p62
    %p64 = scmp.ne.s32.totalorder %s56, %s58
    %p65 = scmp.eq.s32.totalorder %s13, 1
    %p66 = por %p64, %p65
    %p67 = scmp.ne.s32.totalorder %s58, %s59
    %p68 = scmp.eq.s32.totalorder %s13, 0
    %p69 = por %p67, %p68
    %p70 = scmp.ne.s32.totalorder %s58, %s59
    %p71 = scmp.eq.s32.totalorder %s14, 1
    %p72 = por %p70, %p71
    %p74 = scmp.ne.s32.totalorder %s59, %s73
    %p75 = scmp.eq.s32.totalorder %s14, 0
    %p76 = por %p74, %p75
    %s77 = ssub.s32 %s15, %s27
    %p78 = scmp.eq.s32.totalorder %s77, 0
    %s80 = sadd.s32 %s79, 1
    %s81 = scalar_select %p78, %s79, %s80
    %p84 = pneg %p78
    %p85 = scmp.eq.s32.totalorder %s8, 1
    %p86 = por %p84, %p85
    %p87 = scmp.ne.s32.totalorder %s79, %s82
    %p88 = scmp.eq.s32.totalorder %s8, 0
    %p89 = por %p87, %p88
    %p90 = scmp.ne.s32.totalorder %s79, %s82
    %p91 = scmp.eq.s32.totalorder %s13, 1
    %p92 = por %p90, %p91
    %p93 = scmp.ne.s32.totalorder %s82, %s83
    %p94 = scmp.eq.s32.totalorder %s13, 0
    %p95 = por %p93, %p94
    %p96 = scmp.ne.s32.totalorder %s82, %s83
    %p97 = scmp.eq.s32.totalorder %s14, 1
    %p98 = por %p96, %p97
    %p100 = scmp.ne.s32.totalorder %s83, %s99
    %p101 = scmp.eq.s32.totalorder %s14, 0
    %p102 = por %p100, %p101
    %p103 = scmp.le.s32.totalorder 1, %s8
    %p104 = scmp.lt.s32.totalorder %s8, 3
    %p105 = pnand %p103, %p104
    %p106 = pneg %p105
    // Predicated region
    $region9: #{gcn_forward.3} parent=5 // pred_check
      _
    $region10: #{gcn_forward.3} parent=5 // pred_check_branch
      %108 = sbr.rel (%p105) target = $region12
    $region11: #{gcn_forward.3} parent=5 // pred_region
      %s109 = ssub.s32 %s8, 1
      // Predicated region
      $region13: #{gcn_forward.3} parent=11 // pred_check
        %p110 = pneg %p69
      $region14: #{gcn_forward.3} parent=11 // pred_check_branch
        %112 = sbr.rel (%p110) target = $region16
      $region15: #{gcn_forward.3} parent=11 // pred_region
        _
      $region16: #{gcn_forward.3} parent=11 // pred_fallthru
        _
    $region12: #{gcn_forward.3} parent=5 // pred_fallthru
      _
    %p113 = scmp.lt.s32.totalorder %s8, 2
    // Predicated region
    $region17: #{gcn_forward.3} parent=5 // pred_check
      %p114 = pneg %p113
    $region18: #{gcn_forward.3} parent=5 // pred_check_branch
      %116 = sbr.rel (%p114) target = $region20
    $region19: #{gcn_forward.3} parent=5 // pred_region
      // Predicated region
      $region21: #{gcn_forward.3} parent=19 // pred_check
        %p117 = pneg %p42
      $region22: #{gcn_forward.3} parent=19 // pred_check_branch
        %119 = sbr.rel (%p117) target = $region24
      $region23: #{gcn_forward.3} parent=19 // pred_region
        %s120 = smul.u32 4, %s15
        %p121 = scmp.lt.s32.totalorder %s120, 7
        %s122 = scalar_select %p121, %s120, 7
        %p123 = scmp.lt.s32.totalorder %s16, 0
        %s124 = scalar_select %p123, %s16, 0
        %s125 = sadd.s32 %s124, %s122
        %s126 = smul.addr %s125, 8
        %s127 = scalar_lea.vmem %s0, %s126
        %s128 = smul.u32 4, %s15
      $region24: #{gcn_forward.3} parent=19 // pred_fallthru
        _
    $region20: #{gcn_forward.3} parent=5 // pred_fallthru
      _
    %p129 = scmp.le.s32.totalorder 1, %s8
    %p130 = scmp.lt.s32.totalorder %s8, 3
    %p131 = pnand %p129, %p130
    %p132 = pneg %p131
    // Predicated region
    $region25: #{gcn_forward.3} parent=5 // pred_check
      _
    $region26: #{gcn_forward.3} parent=5 // pred_check_branch
      %134 = sbr.rel (%p131) target = $region28
    $region27: #{gcn_forward.3} parent=5 // pred_region
      %s135 = ssub.s32 %s8, 1
      %s136 = smul.u32 4, %s17
      %p137 = scmp.lt.s32.totalorder %s136, 7
      %s138 = scalar_select %p137, %s136, 7
      %p139 = scmp.lt.s32.totalorder %s18, 0
      %s140 = scalar_select %p139, %s18, 0
      %s141 = sadd.s32 %s140, %s138
      %s142 = smul.addr %s141, 8
      %s143 = scalar_lea.vmem %s0, %s142
      %p144 = pneg %p48
      %p145 = pneg %p45
      %p146 = pneg %p69
      %p147 = pneg %p66
      %p148 = pneg %p95
      %p149 = pneg %p92
      %s150 = smul.u32 4, %s17
      %p151 = scmp.lt.s32.totalorder %s150, 7
      %s152 = scalar_select %p151, %s150, 7
      %s153 = smul.addr %s152, 8
      %s154 = scalar_lea.vmem %s2, %s153
      %s155 = smul.u32 4, %s17
      %p156 = scmp.lt.s32.totalorder %s155, 7
      %s157 = scalar_select %p156, %s155, 7
      %p158 = scmp.lt.s32.totalorder %s18, 0
      %s159 = scalar_select %p158, %s18, 0
      %s160 = sadd.s32 %s159, %s157
      %s161 = smul.addr %s160, 8
      %s162 = scalar_lea.vmem %s0, %s161
      %s163 = smul.u32 4, %s17
      %s164 = smul.u32 4, %s17
      %p165 = scmp.lt.s32.totalorder %s164, 7
      %s166 = scalar_select %p165, %s164, 7
      %s167 = smul.addr %s166, 8
      %s168 = scalar_lea.vmem %s2, %s167
      %s169 = smul.u32 4, %s17
      %p170 = scmp.eq.s32.totalorder %s18, 0
      // Predicated region
      $region29: #{gcn_forward.3} parent=27 // pred_check
        %p171 = pneg %p170
      $region30: #{gcn_forward.3} parent=27 // pred_check_branch
        %173 = sbr.rel (%p171) target = $region32
      $region31: #{gcn_forward.3} parent=27 // pred_region
        %vm174 = vcmask 130048
        %175 = vst.msk [vmem:[%s168] sm:$0xff] %vm174, 0.0
        %176 = vst.msk [vmem:[%s168 + $0x8] sm:$0xff] %vm174, 0.0
        %177 = vst.msk [vmem:[%s168 + $0x10] sm:$0xff] %vm174, 0.0
        %178 = vst.msk [vmem:[%s168 + $0x18] sm:$0xff] %vm174, 0.0
      $region32: #{gcn_forward.3} parent=27 // pred_fallthru
        _
      %s179 = smul.u32 %s18, 128
      %v180 = vld [vmem:[%s168] sm:$0xff]
      %v181 = vld [vmem:[%s168 + $0x8] sm:$0xff]
      %v182 = vld [vmem:[%s168 + $0x10] sm:$0xff]
      %v183 = vld [vmem:[%s168 + $0x18] sm:$0xff]
      %v184 = vld [vmem:[%s162] sm:$0xff]
      %v185 = vld [vmem:[%s162 + $0x8] sm:$0xff]
      %v186 = vld [vmem:[%s162 + $0x10] sm:$0xff]
      %v187 = vld [vmem:[%s162 + $0x18] sm:$0xff]
      %s188 = scalar_lea.vmem %s1, %s179
      %v189 = vld [vmem:[%s188] sm:$0xff]
      %v190 = vld [vmem:[%s188 + $0x8] sm:$0xff]
      %v191 = vld [vmem:[%s188 + $0x10] sm:$0xff]
      %v192 = vld [vmem:[%s188 + $0x18] sm:$0xff]
      %v193 = vld [vmem:[%s188 + $0x20] sm:$0xff]
      %v194 = vld [vmem:[%s188 + $0x28] sm:$0xff]
      %v195 = vld [vmem:[%s188 + $0x30] sm:$0xff]
      %v196 = vld [vmem:[%s188 + $0x38] sm:$0xff]
      %v197 = vld [vmem:[%s188 + $0x40] sm:$0xff]
      %v198 = vld [vmem:[%s188 + $0x48] sm:$0xff]
      %v199 = vld [vmem:[%s188 + $0x50] sm:$0xff]
      %v200 = vld [vmem:[%s188 + $0x58] sm:$0xff]
      %v201 = vld [vmem:[%s188 + $0x60] sm:$0xff]
      %v202 = vld [vmem:[%s188 + $0x68] sm:$0xff]
      %v203 = vld [vmem:[%s188 + $0x70] sm:$0xff]
      %v204 = vld [vmem:[%s188 + $0x78] sm:$0xff]
      %205 = vmatpush.msra.mxu0 %v204
      %206 = vmatpush.msra.mxu0 %v203
      %207 = vmatpush.msra.mxu0 %v202
      %208 = vmatpush.msra.mxu0 %v201
      %209 = vmatpush.msra.mxu0 %v200
      %210 = vmatpush.msra.mxu0 %v199
      %211 = vmatpush.msra.mxu0 %v198
      %212 = vmatpush.msra.mxu0 %v197
      %213 = vmatpush.msra.mxu0 %v196
      %214 = vmatpush.msra.mxu0 %v195
      %215 = vmatpush.msra.mxu0 %v194
      %216 = vmatpush.msra.mxu0 %v193
      %217 = vmatpush.msra.mxu0 %v192
      %218 = vmatpush.msra.mxu0 %v191
      %219 = vmatpush.msra.mxu0 %v190
      %220 = vmatpush.msra.mxu0 %v189
      %221 = vmatmul.f32.gmra.mxu0 %v184
      %v222 = vpop.f32.mrf.mxu0
      %v223 = vadd.f32 0.0, %v222
      %224 = vmatmul.f32.gmra.mxu0 %v185
      %v225 = vpop.f32.mrf.mxu0
      %v226 = vadd.f32 0.0, %v225
      %227 = vmatmul.f32.gmra.mxu0 %v186
      %v228 = vpop.f32.mrf.mxu0
      %v229 = vadd.f32 0.0, %v228
      %230 = vmatmul.f32.gmra.mxu0 %v187
      %v231 = vpop.f32.mrf.mxu0
      %v232 = vadd.f32 0.0, %v231
      %233 = vdwg.mxu0
      %v234 = vadd.f32 %v180, %v223
      %v235 = vadd.f32 %v181, %v226
      %v236 = vadd.f32 %v182, %v229
      %v237 = vadd.f32 %v183, %v232
      %vm238 = vcmask 130048
      %239 = vst.msk [vmem:[%s168] sm:$0xff] %vm238, %v234
      %240 = vst.msk [vmem:[%s168 + $0x8] sm:$0xff] %vm238, %v235
      %241 = vst.msk [vmem:[%s168 + $0x10] sm:$0xff] %vm238, %v236
      %242 = vst.msk [vmem:[%s168 + $0x18] sm:$0xff] %vm238, %v237
      %s243 = smul.u32 4, %s17
      %p244 = scmp.lt.s32.totalorder %s243, 7
      %s245 = scalar_select %p244, %s243, 7
      %s246 = smul.addr %s245, 8
      %s247 = scalar_lea.vmem %s2, %s246
      // Predicated region
      $region33: #{gcn_forward.3} parent=27 // pred_check
        %p248 = pneg %p92
      $region34: #{gcn_forward.3} parent=27 // pred_check_branch
        %250 = sbr.rel (%p248) target = $region36
      $region35: #{gcn_forward.3} parent=27 // pred_region
        %s251 = smul.u32 4, %s17
      $region36: #{gcn_forward.3} parent=27 // pred_fallthru
        _
    $region28: #{gcn_forward.3} parent=5 // pred_fallthru
      _
    %p252 = scmp.le.s32.totalorder 2, %s8
    // Predicated region
    $region37: #{gcn_forward.3} parent=5 // pred_check
      %p253 = pneg %p252
    $region38: #{gcn_forward.3} parent=5 // pred_check_branch
      %255 = sbr.rel (%p253) target = $region40
    $region39: #{gcn_forward.3} parent=5 // pred_region
      %s256 = ssub.s32 %s8, 2
      // Predicated region
      $region41: #{gcn_forward.3} parent=39 // pred_check
        %p257 = pneg %p98
      $region42: #{gcn_forward.3} parent=39 // pred_check_branch
        %259 = sbr.rel (%p257) target = $region44
      $region43: #{gcn_forward.3} parent=39 // pred_region
        %s260 = smul.u32 4, %s19
        %p261 = scmp.lt.s32.totalorder %s260, 7
        %s262 = scalar_select %p261, %s260, 7
        %s263 = smul.addr %s262, 8
        %s264 = scalar_lea.vmem %s2, %s263
      $region44: #{gcn_forward.3} parent=39 // pred_fallthru
        _
    $region40: #{gcn_forward.3} parent=5 // pred_fallthru
      _
  $region6: #{gcn_forward.3} parent=0 // loop_footer
    %s12 = sadd.s32 1, %s8
  $region7: #{gcn_forward.3} parent=0 // loop_footer_branch
    %7 = sbr.rel target = $region3
  $region8: #{gcn_forward.3} parent=0 // loop_exit
    _

</llo_original>
